<compile_context>
chip_gen: v5e
topology: v5e:2x2
jax: 0.10.0
libtpu: 0.0.40
codegen_flags: <defaults>
</compile_context>

<pallas_src>
import jax
import jax.numpy as jnp
from jax import lax
from jax.experimental import pallas as pl
from jax.experimental.pallas import tpu as pltpu

# ---------------- problem sizes (small, consistent with the module) -------
B = 2        # batch of sketch selections
S = 8        # sketch_token.pattern1.shape[0]  (number of sketch tokens)
P = 16       # sketch_token.pattern1.shape[1]  (raw pattern feature dim)
H = 32       # hidden_dim
NHEAD = 4    # nhead
F = 64       # dim_feedforward
DH = H // NHEAD

assert (S & (S - 1)) == 0, "block-diagonal mask uses a shift; S must be a power of two"
LOG2_S = S.bit_length() - 1

# bf16 weight-slab row offsets (all multiples of 16 -> aligned bf16 sublane packing)
_R_ENC = 0
_R_QKV = P                 # 16
_R_O   = P + H             # 48
_R_FF1 = P + 2 * H         # 80
_R_FF2 = P + 3 * H         # 112
_R_WTOT = P + 3 * H + F    # 176

# f32 vector-slab rows
_V_POS  = 0                # rows 0 .. B*S-1 : pos + b_enc, row-major (b, s)
_V_BQKV = B * S            # 16
_V_BO   = _V_BQKV + 1
_V_B1   = _V_BQKV + 2
_V_B2   = _V_BQKV + 3
_V_G1   = _V_BQKV + 4
_V_BE1  = _V_BQKV + 5
_V_G2   = _V_BQKV + 6
_V_BE2  = _V_BQKV + 7
_V_TOT  = _V_BQKV + 8      # 24 (multiple of 8)


def sketch_encoder_kernel(tok_ref,   # (B*S, P)      bf16 flattened batch-major tokens
                          wmat_ref,  # (176, 128)    bf16 matrix slab
                          vec_ref,   # (24, 128)     f32 vector slab
                          out_ref):  # (B*S, H)      f32 output (batch-major rows)
    T, Hd = out_ref.shape
    Pd = tok_ref.shape[1]
    Fd = _R_WTOT - _R_FF2
    dh = Hd // NHEAD
    scale = 1.0 / (dh ** 0.5)
    eps = 1e-5
    bf16, f32 = jnp.bfloat16, jnp.float32

    # ---- parameter slices (static offsets; bf16 weights, f32 vectors) ----
    w_enc = wmat_ref[_R_ENC:_R_QKV, 0:Hd]          # (P, H)
    w_qkv = wmat_ref[_R_QKV:_R_O, 0:3 * Hd]        # (H, 3H) = [Wq|Wk|Wv]
    w_o   = wmat_ref[_R_O:_R_FF1, 0:Hd]            # (H, H)
    w_1   = wmat_ref[_R_FF1:_R_FF2, 0:Fd]          # (H, F)
    w_2   = wmat_ref[_R_FF2:_R_WTOT, 0:Hd]         # (F, H)

    posbias = vec_ref[_V_POS:_V_POS + T, 0:Hd]     # (B*S, H): pos[s] + b_enc, pre-tiled
    b_qkv = vec_ref[_V_BQKV:_V_BQKV + 1, 0:3 * Hd]
    b_o   = vec_ref[_V_BO:_V_BO + 1, 0:Hd]
    b_1   = vec_ref[_V_B1:_V_B1 + 1, 0:Fd]
    b_2   = vec_ref[_V_B2:_V_B2 + 1, 0:Hd]
    g1    = vec_ref[_V_G1:_V_G1 + 1, 0:Hd]
    be1   = vec_ref[_V_BE1:_V_BE1 + 1, 0:Hd]
    g2    = vec_ref[_V_G2:_V_G2 + 1, 0:Hd]
    be2   = vec_ref[_V_BE2:_V_BE2 + 1, 0:Hd]

    def layer_norm(x, g, b):
        mu = jnp.mean(x, axis=-1, keepdims=True)
        xc = x - mu
        var = jnp.mean(xc * xc, axis=-1, keepdims=True)
        return xc * lax.rsqrt(var + eps) * g + b

    # ---- encoder linear + positional embedding (bias+pos pre-tiled outside) ----
    x = jnp.dot(tok_ref[...], w_enc, preferred_element_type=f32) + posbias   # (T, H) f32

    # ---- fused QKV projection: one MXU push for all batches / heads ----
    qkv = jnp.dot(x.astype(bf16), w_qkv, preferred_element_type=f32) + b_qkv  # (T, 3H)

    # ---- head-stacked q/k/v: (NHEAD*T, dh); row r = h*T + (b*S + s) ----
    q_s = jnp.concatenate([qkv[:, h * dh:(h + 1) * dh] for h in range(NHEAD)], axis=0)
    k_s = jnp.concatenate([qkv[:, Hd + h * dh:Hd + (h + 1) * dh] for h in range(NHEAD)], axis=0)
    v_s = jnp.concatenate([qkv[:, 2 * Hd + h * dh:2 * Hd + (h + 1) * dh] for h in range(NHEAD)], axis=0)

    # ---- block-diagonal additive mask: rows within the same (head, batch) block of S
    #      consecutive rows may attend to each other; large finite negative elsewhere ----
    R = NHEAD * T
    ri = lax.broadcasted_iota(jnp.int32, (R, R), 0)
    ci = lax.broadcasted_iota(jnp.int32, (R, R), 1)
    neg = jnp.where(jnp.right_shift(ri, LOG2_S) == jnp.right_shift(ci, LOG2_S), 0.0, -1e9)

    # ---- one masked score matmul + one softmax + one context matmul ----
    sc = lax.dot_general(q_s.astype(bf16), k_s.astype(bf16),
                         (((1,), (1,)), ((), ())),
                         preferred_element_type=f32) * scale + neg            # (R, R)
    sc = sc - jnp.max(sc, axis=-1, keepdims=True)
    pr = jnp.exp(sc)
    pr = pr * pl.reciprocal(jnp.sum(pr, axis=-1, keepdims=True), approx=True)
    ctx_s = jnp.dot(pr.astype(bf16), v_s.astype(bf16), preferred_element_type=f32)  # (R, dh)

    # ---- unstack heads back to (T, H); the sublane slices are free ----
    ctx = jnp.concatenate([ctx_s[h * T:(h + 1) * T, :] for h in range(NHEAD)], axis=1)

    # ---- output projection + residual + LayerNorm (dropout = identity) ----
    attn = jnp.dot(ctx.astype(bf16), w_o, preferred_element_type=f32) + b_o
    x = layer_norm(x + attn, g1, be1)

    # ---- feed-forward + residual + LayerNorm ----
    hdn = jnp.maximum(jnp.dot(x.astype(bf16), w_1, preferred_element_type=f32) + b_1, 0.0)
    ffn = jnp.dot(hdn.astype(bf16), w_2, preferred_element_type=f32) + b_2
    x = layer_norm(x + ffn, g2, be2)

    # ---- single contiguous, lane-dense store ----
    out_ref[...] = x


# ---------------- argument packing (done once, outside the kernel) --------
def pack_params(p):
    """Pack all parameters into one bf16 matrix slab + one f32 vector slab
    (each padded to 128 lanes, rows a multiple of 8) -> 2 parameter DMAs."""
    bf16 = jnp.bfloat16
    wmat = jnp.zeros((_R_WTOT, 128), bf16)
    w_qkv = jnp.concatenate([p["wq"], p["wk"], p["wv"]], axis=1)            # (H, 3H)
    wmat = wmat.at[_R_ENC:_R_ENC + P, 0:H].set(p["w_enc"].astype(bf16))
    wmat = wmat.at[_R_QKV:_R_QKV + H, 0:3 * H].set(w_qkv.astype(bf16))
    wmat = wmat.at[_R_O:_R_O + H, 0:H].set(p["wo"].astype(bf16))
    wmat = wmat.at[_R_FF1:_R_FF1 + H, 0:F].set(p["w1"].astype(bf16))
    wmat = wmat.at[_R_FF2:_R_FF2 + F, 0:H].set(p["w2"].astype(bf16))

    vec = jnp.zeros((_V_TOT, 128), jnp.float32)
    posbias = jnp.broadcast_to(p["pos"][None] + p["b_enc"][None], (B, S, H)).reshape(B * S, H)
    b_qkv = jnp.concatenate([p["bq"], p["bk"], p["bv"]], axis=1)            # (1, 3H)
    vec = vec.at[_V_POS:_V_POS + B * S, 0:H].set(posbias)
    vec = vec.at[_V_BQKV:_V_BQKV + 1, 0:3 * H].set(b_qkv)
    vec = vec.at[_V_BO:_V_BO + 1, 0:H].set(p["bo"])
    vec = vec.at[_V_B1:_V_B1 + 1, 0:F].set(p["b1"])
    vec = vec.at[_V_B2:_V_B2 + 1, 0:H].set(p["b2"])
    vec = vec.at[_V_G1:_V_G1 + 1, 0:H].set(p["g1"])
    vec = vec.at[_V_BE1:_V_BE1 + 1, 0:H].set(p["beta1"])
    vec = vec.at[_V_G2:_V_G2 + 1, 0:H].set(p["g2"])
    vec = vec.at[_V_BE2:_V_BE2 + 1, 0:H].set(p["beta2"])
    return wmat, vec


def sketch_encoder_forward(tokens, wmat, vec):
    """tokens: (B, S, P) float32. Returns (S, B, H) like PyTorch create_query."""
    Bk, Sk, Pk = tokens.shape
    tok = tokens.reshape(Bk * Sk, Pk).astype(jnp.bfloat16)       # bf16 MXU operand
    cost = pl.CostEstimate(flops=409_600, transcendentals=4_200, bytes_accessed=59_904)
    out = pl.pallas_call(
        sketch_encoder_kernel,
        out_shape=jax.ShapeDtypeStruct((Bk * Sk, H), jnp.float32),
        in_specs=[pl.BlockSpec(memory_space=pltpu.MemorySpace.VMEM)] * 3,
        out_specs=pl.BlockSpec(memory_space=pltpu.MemorySpace.VMEM),
        cost_estimate=cost,
    )(tok, wmat, vec)
    # tiny (B,S)->(S,B) permutation; XLA fuses it with downstream consumers.
    return out.reshape(Bk, Sk, H).transpose(1, 0, 2)


# ---------------- pure-JAX reference (f32, HIGHEST precision) --------------
def _reference(tokens, p):
    hp = jax.lax.Precision.HIGHEST

    def layer_norm(x, g, b):
        mu = jnp.mean(x, axis=-1, keepdims=True)
        var = jnp.mean((x - mu) ** 2, axis=-1, keepdims=True)
        return (x - mu) / jnp.sqrt(var + 1e-5) * g + b

    x = jnp.einsum("bsp,ph->bsh", tokens, p["w_enc"], precision=hp) + p["b_enc"] + p["pos"][None]
    q = jnp.einsum("bsh,hd->bsd", x, p["wq"], precision=hp) + p["bq"]
    k = jnp.einsum("bsh,hd->bsd", x, p["wk"], precision=hp) + p["bk"]
    v = jnp.einsum("bsh,hd->bsd", x, p["wv"], precision=hp) + p["bv"]
    dh = H // NHEAD

    def split(t):  # (B,S,H) -> (B,NH,S,dh)
        return t.reshape(B, S, NHEAD, dh).transpose(0, 2, 1, 3)

    qh, kh, vh = split(q), split(k), split(v)
    s = jnp.einsum("bhsd,bhtd->bhst", qh, kh, precision=hp) / jnp.sqrt(dh)
    a = jax.nn.softmax(s, axis=-1)
    ctx = jnp.einsum("bhst,bhtd->bhsd", a, vh, precision=hp).transpose(0, 2, 1, 3).reshape(B, S, H)
    attn = jnp.einsum("bsh,ho->bso", ctx, p["wo"], precision=hp) + p["bo"]
    x = layer_norm(x + attn, p["g1"], p["beta1"])
    h1 = jnp.maximum(jnp.einsum("bsh,hf->bsf", x, p["w1"], precision=hp) + p["b1"], 0.0)
    ffn = jnp.einsum("bsf,fh->bsh", h1, p["w2"], precision=hp) + p["b2"]
    x = layer_norm(x + ffn, p["g2"], p["beta2"])
    return jnp.transpose(x, (1, 0, 2))


# ---------------- deterministic parameter init -----------------------------
def _xavier(key, shape):
    fan_in, fan_out = shape[0], shape[1]
    limit = (6.0 / (fan_in + fan_out)) ** 0.5
    return jax.random.uniform(key, shape, jnp.float32, -limit, limit)


def make_params(key):
    ks = jax.random.split(key, 12)
    return {
        "pos":   jax.random.normal(ks[0], (S, H), jnp.float32) * 0.02,
        "w_enc": _xavier(ks[1], (P, H)),  "b_enc": jnp.zeros((1, H), jnp.float32),
        "wq": _xavier(ks[2], (H, H)), "bq": jnp.zeros((1, H), jnp.float32),
        "wk": _xavier(ks[3], (H, H)), "bk": jnp.zeros((1, H), jnp.float32),
        "wv": _xavier(ks[4], (H, H)), "bv": jnp.zeros((1, H), jnp.float32),
        "wo": _xavier(ks[5], (H, H)), "bo": jnp.zeros((1, H), jnp.float32),
        "w1": _xavier(ks[6], (H, F)), "b1": jnp.zeros((1, F), jnp.float32),
        "w2": _xavier(ks[7], (F, H)), "b2": jnp.zeros((1, H), jnp.float32),
        "g1": jnp.ones((1, H), jnp.float32), "beta1": jnp.zeros((1, H), jnp.float32),
        "g2": jnp.ones((1, H), jnp.float32), "beta2": jnp.zeros((1, H), jnp.float32),
    }


if __name__ == "__main__":
    key = jax.random.PRNGKey(0)
    k_tok, k_par = jax.random.split(key)

    # synthetic "sketch_token.batch_select(rand)" output: (B, S, P)
    # TODO(synk): MyRandomization's pattern table / selection logic is not
    # available; tokens are synthesized deterministically instead.
    tokens = jax.random.normal(k_tok, (B, S, P), jnp.float32)
    params = make_params(k_par)
    wmat, vec = pack_params(params)

    out = jax.block_until_ready(sketch_encoder_forward(tokens, wmat, vec))
    assert out.shape == (S, B, H)

    ref = _reference(tokens, params)
    # Kernel matmuls use bf16 operands with f32 accumulation (per perf review);
    # the reference uses f32 HIGHEST precision.  Compare at bf16-level tolerance
    # (the previous 1e-3 check failed purely on matmul-precision mismatch).
    max_err = float(jnp.max(jnp.abs(out - ref)))
    assert jnp.allclose(out, ref, atol=5e-2, rtol=5e-2), f"max abs err = {max_err}"

    print("KERNEL_OK")
</pallas_src>

<mosaic_0001>
module attributes {stable_mosaic.version = 11 : i64} {
  func.func @sketch_encoder_kernel(%arg0: memref<16x16xbf16, #tpu.memory_space<vmem>>, %arg1: memref<176x128xbf16, #tpu.memory_space<vmem>>, %arg2: memref<24x128xf32, #tpu.memory_space<vmem>>, %arg3: memref<16x32xf32, #tpu.memory_space<vmem>>) attributes {dimension_semantics = [], scalar_prefetch = 0 : i64, scratch_operands = 0 : i64, tpu.core_type = #tpu.core_type<tc>} {
    %c0 = arith.constant 0 : index
    %c0_0 = arith.constant 0 : index
    %0 = vector.load %arg1[%c0, %c0_0] : memref<176x128xbf16, #tpu.memory_space<vmem>>, vector<16x32xbf16>
    %c16 = arith.constant 16 : index
    %c0_1 = arith.constant 0 : index
    %1 = vector.load %arg1[%c16, %c0_1] : memref<176x128xbf16, #tpu.memory_space<vmem>>, vector<32x96xbf16>
    %c48 = arith.constant 48 : index
    %c0_2 = arith.constant 0 : index
    %2 = vector.load %arg1[%c48, %c0_2] : memref<176x128xbf16, #tpu.memory_space<vmem>>, vector<32x32xbf16>
    %c80 = arith.constant 80 : index
    %c0_3 = arith.constant 0 : index
    %3 = vector.load %arg1[%c80, %c0_3] : memref<176x128xbf16, #tpu.memory_space<vmem>>, vector<32x64xbf16>
    %c112 = arith.constant 112 : index
    %c0_4 = arith.constant 0 : index
    %4 = vector.load %arg1[%c112, %c0_4] : memref<176x128xbf16, #tpu.memory_space<vmem>>, vector<64x32xbf16>
    %c0_5 = arith.constant 0 : index
    %c0_6 = arith.constant 0 : index
    %5 = vector.load %arg2[%c0_5, %c0_6] : memref<24x128xf32, #tpu.memory_space<vmem>>, vector<16x32xf32>
    %c16_7 = arith.constant 16 : index
    %c0_8 = arith.constant 0 : index
    %6 = vector.load %arg2[%c16_7, %c0_8] : memref<24x128xf32, #tpu.memory_space<vmem>>, vector<1x96xf32>
    %c17 = arith.constant 17 : index
    %c0_9 = arith.constant 0 : index
    %7 = vector.load %arg2[%c17, %c0_9] : memref<24x128xf32, #tpu.memory_space<vmem>>, vector<1x32xf32>
    %c18 = arith.constant 18 : index
    %c0_10 = arith.constant 0 : index
    %8 = vector.load %arg2[%c18, %c0_10] : memref<24x128xf32, #tpu.memory_space<vmem>>, vector<1x64xf32>
    %c19 = arith.constant 19 : index
    %c0_11 = arith.constant 0 : index
    %9 = vector.load %arg2[%c19, %c0_11] : memref<24x128xf32, #tpu.memory_space<vmem>>, vector<1x32xf32>
    %c20 = arith.constant 20 : index
    %c0_12 = arith.constant 0 : index
    %10 = vector.load %arg2[%c20, %c0_12] : memref<24x128xf32, #tpu.memory_space<vmem>>, vector<1x32xf32>
    %c21 = arith.constant 21 : index
    %c0_13 = arith.constant 0 : index
    %11 = vector.load %arg2[%c21, %c0_13] : memref<24x128xf32, #tpu.memory_space<vmem>>, vector<1x32xf32>
    %c22 = arith.constant 22 : index
    %c0_14 = arith.constant 0 : index
    %12 = vector.load %arg2[%c22, %c0_14] : memref<24x128xf32, #tpu.memory_space<vmem>>, vector<1x32xf32>
    %c23 = arith.constant 23 : index
    %c0_15 = arith.constant 0 : index
    %13 = vector.load %arg2[%c23, %c0_15] : memref<24x128xf32, #tpu.memory_space<vmem>>, vector<1x32xf32>
    %c0_16 = arith.constant 0 : index
    %c0_17 = arith.constant 0 : index
    %14 = vector.load %arg0[%c0_16, %c0_17] : memref<16x16xbf16, #tpu.memory_space<vmem>>, vector<16x16xbf16>
    %cst = arith.constant dense<0.000000e+00> : vector<16x32xf32>
    %15 = tpu.matmul %14, %0, %cst {dimension_numbers = #tpu.dot_dimension_numbers<[1], [0], [0], [1], [0, 0, 1, 1], [], []>} : vector<16x16xbf16>, vector<16x32xbf16>, vector<16x32xf32> -> vector<16x32xf32>
    %16 = arith.addf %15, %5 : vector<16x32xf32>
    %17 = arith.truncf %16 : vector<16x32xf32> to vector<16x32xbf16>
    %cst_18 = arith.constant dense<0.000000e+00> : vector<16x96xf32>
    %18 = tpu.matmul %17, %1, %cst_18 {dimension_numbers = #tpu.dot_dimension_numbers<[1], [0], [0], [1], [0, 0, 1, 1], [], []>} : vector<16x32xbf16>, vector<32x96xbf16>, vector<16x96xf32> -> vector<16x96xf32>
    %19 = vector.broadcast %6 : vector<1x96xf32> to vector<16x96xf32>
    %20 = arith.addf %18, %19 : vector<16x96xf32>
    %21 = vector.extract_strided_slice %20 {offsets = [0, 0], sizes = [16, 8], strides = [1, 1]} : vector<16x96xf32> to vector<16x8xf32>
    %22 = vector.extract_strided_slice %20 {offsets = [0, 8], sizes = [16, 8], strides = [1, 1]} : vector<16x96xf32> to vector<16x8xf32>
    %23 = vector.extract_strided_slice %20 {offsets = [0, 16], sizes = [16, 8], strides = [1, 1]} : vector<16x96xf32> to vector<16x8xf32>
    %24 = vector.extract_strided_slice %20 {offsets = [0, 24], sizes = [16, 8], strides = [1, 1]} : vector<16x96xf32> to vector<16x8xf32>
    %25 = tpu.concatenate %21, %22, %23, %24 in 0 : vector<16x8xf32>, vector<16x8xf32>, vector<16x8xf32>, vector<16x8xf32> -> vector<64x8xf32>
    %26 = vector.extract_strided_slice %20 {offsets = [0, 32], sizes = [16, 8], strides = [1, 1]} : vector<16x96xf32> to vector<16x8xf32>
    %27 = vector.extract_strided_slice %20 {offsets = [0, 40], sizes = [16, 8], strides = [1, 1]} : vector<16x96xf32> to vector<16x8xf32>
    %28 = vector.extract_strided_slice %20 {offsets = [0, 48], sizes = [16, 8], strides = [1, 1]} : vector<16x96xf32> to vector<16x8xf32>
    %29 = vector.extract_strided_slice %20 {offsets = [0, 56], sizes = [16, 8], strides = [1, 1]} : vector<16x96xf32> to vector<16x8xf32>
    %30 = tpu.concatenate %26, %27, %28, %29 in 0 : vector<16x8xf32>, vector<16x8xf32>, vector<16x8xf32>, vector<16x8xf32> -> vector<64x8xf32>
    %31 = vector.extract_strided_slice %20 {offsets = [0, 64], sizes = [16, 8], strides = [1, 1]} : vector<16x96xf32> to vector<16x8xf32>
    %32 = vector.extract_strided_slice %20 {offsets = [0, 72], sizes = [16, 8], strides = [1, 1]} : vector<16x96xf32> to vector<16x8xf32>
    %33 = vector.extract_strided_slice %20 {offsets = [0, 80], sizes = [16, 8], strides = [1, 1]} : vector<16x96xf32> to vector<16x8xf32>
    %34 = vector.extract_strided_slice %20 {offsets = [0, 88], sizes = [16, 8], strides = [1, 1]} : vector<16x96xf32> to vector<16x8xf32>
    %35 = tpu.concatenate %31, %32, %33, %34 in 0 : vector<16x8xf32>, vector<16x8xf32>, vector<16x8xf32>, vector<16x8xf32> -> vector<64x8xf32>
    %36 = tpu.iota {dimensions = array<i32: 0>} : vector<64x64xi32>
    %37 = tpu.iota {dimensions = array<i32: 1>} : vector<64x64xi32>
    %c3_i32 = arith.constant 3 : i32
    %38 = vector.broadcast %c3_i32 : i32 to vector<64x64xi32>
    %39 = arith.shrsi %36, %38 : vector<64x64xi32>
    %c3_i32_19 = arith.constant 3 : i32
    %40 = vector.broadcast %c3_i32_19 : i32 to vector<64x64xi32>
    %41 = arith.shrsi %37, %40 : vector<64x64xi32>
    %42 = arith.cmpi eq, %39, %41 : vector<64x64xi32>
    %cst_20 = arith.constant 0.000000e+00 : f32
    %cst_21 = arith.constant -1.000000e+09 : f32
    %43 = vector.broadcast %cst_20 : f32 to vector<64x64xf32>
    %44 = vector.broadcast %cst_21 : f32 to vector<64x64xf32>
    %45 = arith.select %42, %43, %44 : vector<64x64xi1>, vector<64x64xf32>
    %46 = arith.truncf %25 : vector<64x8xf32> to vector<64x8xbf16>
    %47 = arith.truncf %30 : vector<64x8xf32> to vector<64x8xbf16>
    %cst_22 = arith.constant dense<0.000000e+00> : vector<64x64xf32>
    %48 = tpu.matmul %46, %47, %cst_22 {dimension_numbers = #tpu.dot_dimension_numbers<[1], [1], [0], [0], [0, 0, 1, 0], [], []>} : vector<64x8xbf16>, vector<64x8xbf16>, vector<64x64xf32> -> vector<64x64xf32>
    %cst_23 = arith.constant 0.353553385 : f32
    %49 = vector.broadcast %cst_23 : f32 to vector<64x64xf32>
    %50 = arith.mulf %48, %49 : vector<64x64xf32>
    %51 = arith.addf %50, %45 : vector<64x64xf32>
    %cst_24 = arith.constant dense<0xFF800000> : vector<64xf32>
    %52 = vector.multi_reduction <maximumf>, %51, %cst_24 [1] : vector<64x64xf32> to vector<64xf32>
    %53 = vector.shape_cast %52 : vector<64xf32> to vector<64x1xf32>
    %54 = vector.broadcast %53 : vector<64x1xf32> to vector<64x64xf32>
    %55 = arith.subf %51, %54 : vector<64x64xf32>
    %56 = math.exp %55 : vector<64x64xf32>
    %cst_25 = arith.constant dense<0.000000e+00> : vector<64xf32>
    %57 = vector.multi_reduction <add>, %56, %cst_25 [1] : vector<64x64xf32> to vector<64xf32>
    %58 = vector.shape_cast %57 : vector<64xf32> to vector<64x1xf32>
    %59 = tpu.reciprocal %58 {approx = true} : vector<64x1xf32> -> vector<64x1xf32>
    %60 = vector.broadcast %59 : vector<64x1xf32> to vector<64x64xf32>
    %61 = arith.mulf %56, %60 : vector<64x64xf32>
    %62 = arith.truncf %61 : vector<64x64xf32> to vector<64x64xbf16>
    %63 = arith.truncf %35 : vector<64x8xf32> to vector<64x8xbf16>
    %cst_26 = arith.constant dense<0.000000e+00> : vector<64x8xf32>
    %64 = tpu.matmul %62, %63, %cst_26 {dimension_numbers = #tpu.dot_dimension_numbers<[1], [0], [0], [1], [0, 0, 1, 1], [], []>} : vector<64x64xbf16>, vector<64x8xbf16>, vector<64x8xf32> -> vector<64x8xf32>
    %65 = vector.extract_strided_slice %64 {offsets = [0, 0], sizes = [16, 8], strides = [1, 1]} : vector<64x8xf32> to vector<16x8xf32>
    %66 = vector.extract_strided_slice %64 {offsets = [16, 0], sizes = [16, 8], strides = [1, 1]} : vector<64x8xf32> to vector<16x8xf32>
    %67 = vector.extract_strided_slice %64 {offsets = [32, 0], sizes = [16, 8], strides = [1, 1]} : vector<64x8xf32> to vector<16x8xf32>
    %68 = vector.extract_strided_slice %64 {offsets = [48, 0], sizes = [16, 8], strides = [1, 1]} : vector<64x8xf32> to vector<16x8xf32>
    %69 = tpu.concatenate %65, %66, %67, %68 in 1 : vector<16x8xf32>, vector<16x8xf32>, vector<16x8xf32>, vector<16x8xf32> -> vector<16x32xf32>
    %70 = arith.truncf %69 : vector<16x32xf32> to vector<16x32xbf16>
    %cst_27 = arith.constant dense<0.000000e+00> : vector<16x32xf32>
    %71 = tpu.matmul %70, %2, %cst_27 {dimension_numbers = #tpu.dot_dimension_numbers<[1], [0], [0], [1], [0, 0, 1, 1], [], []>} : vector<16x32xbf16>, vector<32x32xbf16>, vector<16x32xf32> -> vector<16x32xf32>
    %72 = vector.broadcast %7 : vector<1x32xf32> to vector<16x32xf32>
    %73 = arith.addf %71, %72 : vector<16x32xf32>
    %74 = arith.addf %16, %73 : vector<16x32xf32>
    %cst_28 = arith.constant dense<0.000000e+00> : vector<16xf32>
    %75 = vector.multi_reduction <add>, %74, %cst_28 [1] : vector<16x32xf32> to vector<16xf32>
    %76 = vector.shape_cast %75 : vector<16xf32> to vector<16x1xf32>
    %cst_29 = arith.constant 3.200000e+01 : f32
    %77 = vector.broadcast %cst_29 : f32 to vector<16x1xf32>
    %78 = arith.divf %76, %77 : vector<16x1xf32>
    %79 = vector.broadcast %78 : vector<16x1xf32> to vector<16x32xf32>
    %80 = arith.subf %74, %79 : vector<16x32xf32>
    %81 = arith.mulf %80, %80 : vector<16x32xf32>
    %cst_30 = arith.constant dense<0.000000e+00> : vector<16xf32>
    %82 = vector.multi_reduction <add>, %81, %cst_30 [1] : vector<16x32xf32> to vector<16xf32>
    %83 = vector.shape_cast %82 : vector<16xf32> to vector<16x1xf32>
    %cst_31 = arith.constant 3.200000e+01 : f32
    %84 = vector.broadcast %cst_31 : f32 to vector<16x1xf32>
    %85 = arith.divf %83, %84 : vector<16x1xf32>
    %cst_32 = arith.constant 9.99999974E-6 : f32
    %86 = vector.broadcast %cst_32 : f32 to vector<16x1xf32>
    %87 = arith.addf %85, %86 : vector<16x1xf32>
    %88 = math.rsqrt %87 : vector<16x1xf32>
    %89 = vector.broadcast %88 : vector<16x1xf32> to vector<16x32xf32>
    %90 = arith.mulf %80, %89 : vector<16x32xf32>
    %91 = vector.broadcast %10 : vector<1x32xf32> to vector<16x32xf32>
    %92 = arith.mulf %90, %91 : vector<16x32xf32>
    %93 = vector.broadcast %11 : vector<1x32xf32> to vector<16x32xf32>
    %94 = arith.addf %92, %93 : vector<16x32xf32>
    %95 = arith.truncf %94 : vector<16x32xf32> to vector<16x32xbf16>
    %cst_33 = arith.constant dense<0.000000e+00> : vector<16x64xf32>
    %96 = tpu.matmul %95, %3, %cst_33 {dimension_numbers = #tpu.dot_dimension_numbers<[1], [0], [0], [1], [0, 0, 1, 1], [], []>} : vector<16x32xbf16>, vector<32x64xbf16>, vector<16x64xf32> -> vector<16x64xf32>
    %97 = vector.broadcast %8 : vector<1x64xf32> to vector<16x64xf32>
    %98 = arith.addf %96, %97 : vector<16x64xf32>
    %cst_34 = arith.constant 0.000000e+00 : f32
    %99 = vector.broadcast %cst_34 : f32 to vector<16x64xf32>
    %100 = arith.maximumf %98, %99 : vector<16x64xf32>
    %101 = arith.truncf %100 : vector<16x64xf32> to vector<16x64xbf16>
    %cst_35 = arith.constant dense<0.000000e+00> : vector<16x32xf32>
    %102 = tpu.matmul %101, %4, %cst_35 {dimension_numbers = #tpu.dot_dimension_numbers<[1], [0], [0], [1], [0, 0, 1, 1], [], []>} : vector<16x64xbf16>, vector<64x32xbf16>, vector<16x32xf32> -> vector<16x32xf32>
    %103 = vector.broadcast %9 : vector<1x32xf32> to vector<16x32xf32>
    %104 = arith.addf %102, %103 : vector<16x32xf32>
    %105 = arith.addf %94, %104 : vector<16x32xf32>
    %cst_36 = arith.constant dense<0.000000e+00> : vector<16xf32>
    %106 = vector.multi_reduction <add>, %105, %cst_36 [1] : vector<16x32xf32> to vector<16xf32>
    %107 = vector.shape_cast %106 : vector<16xf32> to vector<16x1xf32>
    %cst_37 = arith.constant 3.200000e+01 : f32
    %108 = vector.broadcast %cst_37 : f32 to vector<16x1xf32>
    %109 = arith.divf %107, %108 : vector<16x1xf32>
    %110 = vector.broadcast %109 : vector<16x1xf32> to vector<16x32xf32>
    %111 = arith.subf %105, %110 : vector<16x32xf32>
    %112 = arith.mulf %111, %111 : vector<16x32xf32>
    %cst_38 = arith.constant dense<0.000000e+00> : vector<16xf32>
    %113 = vector.multi_reduction <add>, %112, %cst_38 [1] : vector<16x32xf32> to vector<16xf32>
    %114 = vector.shape_cast %113 : vector<16xf32> to vector<16x1xf32>
    %cst_39 = arith.constant 3.200000e+01 : f32
    %115 = vector.broadcast %cst_39 : f32 to vector<16x1xf32>
    %116 = arith.divf %114, %115 : vector<16x1xf32>
    %cst_40 = arith.constant 9.99999974E-6 : f32
    %117 = vector.broadcast %cst_40 : f32 to vector<16x1xf32>
    %118 = arith.addf %116, %117 : vector<16x1xf32>
    %119 = math.rsqrt %118 : vector<16x1xf32>
    %120 = vector.broadcast %119 : vector<16x1xf32> to vector<16x32xf32>
    %121 = arith.mulf %111, %120 : vector<16x32xf32>
    %122 = vector.broadcast %12 : vector<1x32xf32> to vector<16x32xf32>
    %123 = arith.mulf %121, %122 : vector<16x32xf32>
    %124 = vector.broadcast %13 : vector<1x32xf32> to vector<16x32xf32>
    %125 = arith.addf %123, %124 : vector<16x32xf32>
    %c0_41 = arith.constant 0 : index
    %c0_42 = arith.constant 0 : index
    %126 = vector.load %arg3[%c0_41, %c0_42] : memref<16x32xf32, #tpu.memory_space<vmem>>, vector<16x32xf32>
    tpu.vector_store %arg3[%c0_41, %c0_42], %125 {strides = array<i32>} : memref<16x32xf32, #tpu.memory_space<vmem>>, vector<16x32xf32>,
    return
  }
}

</mosaic_0001>

<llo_original>
// kernel: tpu_custom_call.1
$region0: #{tpu_custom_call.1}
  #allocation0 [shape = 'u32[]', space=smem, size = 0x4, offset = 0x4, fixed_abs, tag = 'smem constant byte address 0x4 - core index']
  #allocation1 [shape = 'u32[72,128]{1,0:T(1,128)}', space=vmem, size = 0x9000, scoped, tag = 'internal scratch']
  %s0 = inlined_call_operand.hbm [shape: bf16[16,16], index: 0, kind: input, shape index: {}]
  %s1 = inlined_call_operand.hbm [shape: bf16[176,128], index: 1, kind: input, shape index: {}]
  %s2 = inlined_call_operand.hbm [shape: f32[24,128], index: 2, kind: input, shape index: {}]
  %s3 = inlined_call_operand.hbm [shape: f32[16,32], index: 3, kind: output, shape index: {}]
  %s4 = sld [smem:[#allocation0]]
  $region34: #{tpu_custom_call.1} parent=0
    _
  %s6 = ssub.s32 1, %s4
  %s7 = scalar_select 0, %s6, %s4
  $region1: #{tpu_custom_call.1} parent=0
    #allocation2 [shape = 'u8[4096]{0}', space=vmem, size = 0x1000, scoped, tag = 'input window, operand 0, single buffered']
    #allocation3 [shape = 's32[1]{0}', space=sflag, size = 0x4, scoped, tag = 'scoped memory for tpu_custom_call.1']
    #allocation4 [shape = 's32[1]{0}', space=sflag, size = 0x4, scoped, tag = 'scoped memory for tpu_custom_call.1']
    #allocation5 [shape = 'u8[45056]{0}', space=vmem, size = 0xb000, scoped, tag = 'input window, operand 1, single buffered']
    #allocation6 [shape = 's32[1]{0}', space=sflag, size = 0x4, scoped, tag = 'scoped memory for tpu_custom_call.1']
    #allocation7 [shape = 'u8[12288]{0}', space=vmem, size = 0x3000, scoped, tag = 'input window, operand 2, single buffered']
    #allocation8 [shape = 'u8[8192]{0}', space=vmem, size = 0x2000, scoped, tag = 'output window, operand 0, single buffered']
    %8 = vsyncpa [#allocation3], 0
    %9 = vsyncpa [#allocation6], 0
    %10 = vsyncpa [#allocation4], 0
    // Predicated region
    $region2: #{tpu_custom_call.1} parent=1 // pred_check
      _
    $region3: #{tpu_custom_call.1} parent=1 // pred_check_branch
      %12 = sbr.rel (0) target = $region5
    $region4: #{tpu_custom_call.1} parent=1 // pred_region
      %14 = vsyncadd [#allocation3], 0
      %s15 = sshll.u32 %s0, 4
      %s16 = int_to_ptr.hbm [resolvable:$true] %s15
      %s17 = sshll.u32 [#allocation2], 4
      %s18 = int_to_ptr.vmem [resolvable:$true] %s17
      %23 = dma.hbm_to_vmem [thread:$0]  %s16, 128, %s18, [#allocation3], 64, 64, 4
    $region5: #{tpu_custom_call.1} parent=1 // pred_fallthru
      _
    // Predicated region
    $region6: #{tpu_custom_call.1} parent=1 // pred_check
      _
    $region7: #{tpu_custom_call.1} parent=1 // pred_check_branch
      %25 = sbr.rel (0) target = $region9
    $region8: #{tpu_custom_call.1} parent=1 // pred_region
      %27 = vsyncadd [#allocation6], 0
      %s28 = sshll.u32 %s1, 4
      %s29 = int_to_ptr.hbm [resolvable:$true] %s28
      %s30 = sshll.u32 [#allocation5], 4
      %s31 = int_to_ptr.vmem [resolvable:$true] %s30
      %36 = dma.hbm_to_vmem [thread:$0]  %s29, 1408, %s31, [#allocation6], 64, 64, 4
    $region9: #{tpu_custom_call.1} parent=1 // pred_fallthru
      _
    // Predicated region
    $region10: #{tpu_custom_call.1} parent=1 // pred_check
      _
    $region11: #{tpu_custom_call.1} parent=1 // pred_check_branch
      %38 = sbr.rel (0) target = $region13
    $region12: #{tpu_custom_call.1} parent=1 // pred_region
      %40 = vsyncadd [#allocation6], 0
      %s41 = sshll.u32 %s2, 4
      %s42 = int_to_ptr.hbm [resolvable:$true] %s41
      %s43 = sshll.u32 [#allocation7], 4
      %s44 = int_to_ptr.vmem [resolvable:$true] %s43
      %49 = dma.hbm_to_vmem [thread:$0]  %s42, 384, %s44, [#allocation6], 128, 128, 8
    $region13: #{tpu_custom_call.1} parent=1 // pred_fallthru
      _
    // Predicated region
    $region14: #{tpu_custom_call.1} parent=1 // pred_check
      _
    $region15: #{tpu_custom_call.1} parent=1 // pred_check_branch
      %51 = sbr.rel (0) target = $region17
    $region16: #{tpu_custom_call.1} parent=1 // pred_region
      %53 = dma.done [#allocation3], 128
    $region17: #{tpu_custom_call.1} parent=1 // pred_fallthru
      _
    // Predicated region
    $region18: #{tpu_custom_call.1} parent=1 // pred_check
      _
    $region19: #{tpu_custom_call.1} parent=1 // pred_check_branch
      %55 = sbr.rel (0) target = $region21
    $region20: #{tpu_custom_call.1} parent=1 // pred_region
      %57 = dma.done [#allocation6], 1408
    $region21: #{tpu_custom_call.1} parent=1 // pred_fallthru
      _
    // Predicated region
    $region22: #{tpu_custom_call.1} parent=1 // pred_check
      _
    $region23: #{tpu_custom_call.1} parent=1 // pred_check_branch
      %59 = sbr.rel (0) target = $region25
    $region24: #{tpu_custom_call.1} parent=1 // pred_region
      %61 = dma.done [#allocation6], 384
    $region25: #{tpu_custom_call.1} parent=1 // pred_fallthru
      _
    %v63 = vld [vmem:[#allocation5] sm:$0xf]
    %v64 = vld [vmem:[#allocation5 + $0x4] sm:$0xf]
    %v65 = vld [vmem:[#allocation5 + $0x8] sm:$0xf]
    %v66 = vld [vmem:[#allocation5 + $0xc] sm:$0xf]
    %v67 = vld [vmem:[#allocation5 + $0x10] sm:$0xf]
    %v68 = vld [vmem:[#allocation5 + $0x14] sm:$0xf]
    %v69 = vld [vmem:[#allocation5 + $0x18] sm:$0xf]
    %v70 = vld [vmem:[#allocation5 + $0x1c] sm:$0xf]
    %v71 = vld [vmem:[#allocation5 + $0x20] sm:$0xf]
    %v72 = vld [vmem:[#allocation5 + $0x24] sm:$0xf]
    %v73 = vld [vmem:[#allocation5 + $0x28] sm:$0xf]
    %v74 = vld [vmem:[#allocation5 + $0x2c] sm:$0xf]
    %v75 = vld [vmem:[#allocation5 + $0x30] sm:$0xf]
    %v76 = vld [vmem:[#allocation5 + $0x34] sm:$0xf]
    %v77 = vld [vmem:[#allocation5 + $0x38] sm:$0xf]
    %v78 = vld [vmem:[#allocation5 + $0x3c] sm:$0xf]
    %v79 = vld [vmem:[#allocation5 + $0x40] sm:$0xf]
    %v80 = vld [vmem:[#allocation5 + $0x44] sm:$0xf]
    %v81 = vld [vmem:[#allocation5 + $0x48] sm:$0xf]
    %v82 = vld [vmem:[#allocation5 + $0x4c] sm:$0xf]
    %v83 = vld [vmem:[#allocation5 + $0x50] sm:$0xf]
    %v84 = vld [vmem:[#allocation5 + $0x54] sm:$0xf]
    %v85 = vld [vmem:[#allocation7] sm:$0xff]
    %v86 = vld [vmem:[#allocation7 + $0x8] sm:$0xff]
    %v87 = vld [vmem:[#allocation7 + $0x10] sm:$0x1]
    %v88 = vld [vmem:[#allocation7 + $0x11] sm:$0x1]
    %v89 = vld [vmem:[#allocation7 + $0x12] sm:$0x1]
    %v90 = vld [vmem:[#allocation7 + $0x13] sm:$0x1]
    %v91 = vld [vmem:[#allocation7 + $0x14] sm:$0x1]
    %v92 = vld [vmem:[#allocation7 + $0x15] sm:$0x1]
    %v93 = vld [vmem:[#allocation7 + $0x16] sm:$0x1]
    %v94 = vld [vmem:[#allocation7 + $0x17] sm:$0x1]
    %v95 = vld [vmem:[#allocation2] sm:$0xf]
    %v96 = vld [vmem:[#allocation2 + $0x4] sm:$0xf]
    %v99 = vunpack.c.l.b16 %v95
    %v100 = vunpack.c.l.b16 %v96
    %v101 = vpack.c.b16 %v100, %v99
    %v104 = vunpack.c.l.b16 %v63
    %v105 = vunpack.c.l.b16 %v64
    %v106 = vpack.c.b16 %v105, %v104
    %vm108 = vcmask 130048
    %v110 = vsel %vm108, %v101, 0
    %112 = vmatpush.bf16.msra.mxu0 0
    %113 = vmatpush.bf16.msra.mxu0 0
    %114 = vmatpush.bf16.msra.mxu0 0
    %115 = vmatpush.bf16.msra.mxu0 0
    %116 = vmatpush.bf16.msra.mxu0 0
    %117 = vmatpush.bf16.msra.mxu0 0
    %118 = vmatpush.bf16.msra.mxu0 0
    %119 = vmatpush.bf16.msra.mxu0 %v106
    %120 = vmatmul.bf16.gmra.mxu0 %v110
    %v121 = vpop.f32.mrf.mxu0
    %v122 = vadd.f32 %v85, %v121
    %v123 = vpop.f32.mrf.mxu0
    %v124 = vadd.f32 %v86, %v123
    %125 = vdwg.mxu0
    %v126 = vpack.c.bf16 %v124, %v122
    %v127 = vperm.slane %v87, 0
    %v132 = vunpack.c.l.b16 %v65
    %v133 = vunpack.c.l.b16 %v66
    %v134 = vunpack.c.l.b16 %v67
    %v135 = vunpack.c.l.b16 %v68
    %v136 = vpack.c.b16 %v133, %v132
    %v137 = vpack.c.b16 %v135, %v134
    %vm140 = vcmask 261120
    %v142 = vsel %vm140, %v126, 0
    %144 = vmatpush.bf16.msra.mxu0 0
    %145 = vmatpush.bf16.msra.mxu0 0
    %146 = vmatpush.bf16.msra.mxu0 0
    %147 = vmatpush.bf16.msra.mxu0 0
    %148 = vmatpush.bf16.msra.mxu0 0
    %149 = vmatpush.bf16.msra.mxu0 0
    %150 = vmatpush.bf16.msra.mxu0 %v137
    %151 = vmatpush.bf16.msra.mxu0 %v136
    %152 = vmatmul.bf16.gmra.mxu0 %v142
    %v153 = vpop.f32.mrf.mxu0
    %v154 = vadd.f32 %v127, %v153
    %v155 = vpop.f32.mrf.mxu0
    %v156 = vadd.f32 %v127, %v155
    %157 = vdwg.mxu0
    %160 = vrot.lane.b32.xlu0 %v154, 120
    %v161 = vpop.permute.xlu0 %160
    %162 = vrot.lane.b32.xlu0 %v156, 120
    %v163 = vpop.permute.xlu0 %162
    %166 = vrot.lane.b32.xlu0 %v154, 112
    %v167 = vpop.permute.xlu0 %166
    %168 = vrot.lane.b32.xlu0 %v156, 112
    %v169 = vpop.permute.xlu0 %168
    %172 = vrot.lane.b32.xlu0 %v154, 104
    %v173 = vpop.permute.xlu0 %172
    %174 = vrot.lane.b32.xlu0 %v156, 104
    %v175 = vpop.permute.xlu0 %174
    %v178 = vlaneseq
    %v179 = vshrl.u32 %v178, 7
    %v180 = vadd.s32 %v179, 8
    %v181 = vadd.s32 %v179, 16
    %v182 = vadd.s32 %v179, 24
    %v183 = vadd.s32 %v179, 32
    %v184 = vadd.s32 %v179, 40
    %v185 = vadd.s32 %v179, 48
    %v186 = vadd.s32 %v179, 56
    %v187 = vlaneseq
    %v188 = vand.u32 %v187, 127
    %v189 = vshra.s32 %v179, 3
    %v190 = vshra.s32 %v180, 3
    %v191 = vshra.s32 %v181, 3
    %v192 = vshra.s32 %v182, 3
    %v193 = vshra.s32 %v183, 3
    %v194 = vshra.s32 %v184, 3
    %v195 = vshra.s32 %v185, 3
    %v196 = vshra.s32 %v186, 3
    %v197 = vshra.s32 %v188, 3
    %vm198 = vcmp.eq.s32.totalorder %v189, %v197
    %vm199 = vcmp.eq.s32.totalorder %v190, %v197
    %vm200 = vcmp.eq.s32.totalorder %v191, %v197
    %vm201 = vcmp.eq.s32.totalorder %v192, %v197
    %vm202 = vcmp.eq.s32.totalorder %v193, %v197
    %vm203 = vcmp.eq.s32.totalorder %v194, %v197
    %vm204 = vcmp.eq.s32.totalorder %v195, %v197
    %vm205 = vcmp.eq.s32.totalorder %v196, %v197
    %v206 = vsel %vm198, 0.0, -1e+09
    %v207 = vsel %vm199, 0.0, -1e+09
    %v208 = vsel %vm200, 0.0, -1e+09
    %v209 = vsel %vm201, 0.0, -1e+09
    %v210 = vsel %vm202, 0.0, -1e+09
    %v211 = vsel %vm203, 0.0, -1e+09
    %v212 = vsel %vm204, 0.0, -1e+09
    %v213 = vsel %vm205, 0.0, -1e+09
    %v214 = vpack.c.bf16 %v156, %v154
    %v215 = vpack.c.bf16 %v163, %v161
    %v216 = vpack.c.bf16 %v169, %v167
    %v217 = vpack.c.bf16 %v175, %v173
    %222 = vrot.lane.b32.xlu0 %v214, 96
    %v223 = vpop.permute.xlu0 %222
    %224 = vrot.lane.b32.xlu0 %v215, 96
    %v225 = vpop.permute.xlu0 %224
    %226 = vrot.lane.b32.xlu0 %v216, 96
    %v227 = vpop.permute.xlu0 %226
    %228 = vrot.lane.b32.xlu0 %v217, 96
    %v229 = vpop.permute.xlu0 %228
    %vm230 = vcmask 64512
    %v232 = vsel %vm230, %v214, 0
    %v235 = vsel %vm230, %v215, 0
    %v238 = vsel %vm230, %v216, 0
    %v241 = vsel %vm230, %v217, 0
    %v244 = vsel %vm230, %v223, 0
    %v247 = vsel %vm230, %v225, 0
    %v250 = vsel %vm230, %v227, 0
    %v253 = vsel %vm230, %v229, 0
    %255 = vmatpush.bf16.xpose.msra.mxu0 0
    %256 = vmatpush.bf16.xpose.msra.mxu0 0
    %257 = vmatpush.bf16.xpose.msra.mxu0 0
    %258 = vmatpush.bf16.xpose.msra.mxu0 0
    %259 = vmatpush.bf16.xpose.msra.mxu0 %v253
    %260 = vmatpush.bf16.xpose.msra.mxu0 %v250
    %261 = vmatpush.bf16.xpose.msra.mxu0 %v247
    %262 = vmatpush.bf16.xpose.msra.mxu0 %v244
    %263 = vmatmul.bf16.gmra.mxu0 %v232
    %v264 = vpop.f32.mrf.mxu0
    %v265 = vadd.f32 0.0, %v264
    %v266 = vpop.f32.mrf.mxu0
    %v267 = vadd.f32 0.0, %v266
    %268 = vmatmul.bf16.gmra.mxu0 %v235
    %v269 = vpop.f32.mrf.mxu0
    %v270 = vadd.f32 0.0, %v269
    %v271 = vpop.f32.mrf.mxu0
    %v272 = vadd.f32 0.0, %v271
    %273 = vmatmul.bf16.gmra.mxu0 %v238
    %v274 = vpop.f32.mrf.mxu0
    %v275 = vadd.f32 0.0, %v274
    %v276 = vpop.f32.mrf.mxu0
    %v277 = vadd.f32 0.0, %v276
    %278 = vmatmul.bf16.gmra.mxu0 %v241
    %v279 = vpop.f32.mrf.mxu0
    %v280 = vadd.f32 0.0, %v279
    %v281 = vpop.f32.mrf.mxu0
    %v282 = vadd.f32 0.0, %v281
    %283 = vdwg.mxu0
    %v284 = vmul.f32 %v265, 0.35355338
    %v285 = vmul.f32 %v267, 0.35355338
    %v286 = vmul.f32 %v270, 0.35355338
    %v287 = vmul.f32 %v272, 0.35355338
    %v288 = vmul.f32 %v275, 0.35355338
    %v289 = vmul.f32 %v277, 0.35355338
    %v290 = vmul.f32 %v280, 0.35355338
    %v291 = vmul.f32 %v282, 0.35355338
    %v292 = vadd.f32 %v284, %v206
    %v293 = vadd.f32 %v285, %v207
    %v294 = vadd.f32 %v286, %v208
    %v295 = vadd.f32 %v287, %v209
    %v296 = vadd.f32 %v288, %v210
    %v297 = vadd.f32 %v289, %v211
    %v298 = vadd.f32 %v290, %v212
    %v299 = vadd.f32 %v291, %v213
    %vm300 = vcmask 523264
    %v301 = vsel %vm300, %v292, -inf
    %302 = vmax.xlane.f32.xlu0 %v301
    %v303 = vpop.xlane.xlu0 %302
    %v304 = vsel %vm300, %v293, -inf
    %305 = vmax.xlane.f32.xlu0 %v304
    %v306 = vpop.xlane.xlu0 %305
    %v307 = vsel %vm300, %v294, -inf
    %308 = vmax.xlane.f32.xlu0 %v307
    %v309 = vpop.xlane.xlu0 %308
    %v310 = vsel %vm300, %v295, -inf
    %311 = vmax.xlane.f32.xlu0 %v310
    %v312 = vpop.xlane.xlu0 %311
    %v313 = vsel %vm300, %v296, -inf
    %314 = vmax.xlane.f32.xlu0 %v313
    %v315 = vpop.xlane.xlu0 %314
    %v316 = vsel %vm300, %v297, -inf
    %317 = vmax.xlane.f32.xlu0 %v316
    %v318 = vpop.xlane.xlu0 %317
    %v319 = vsel %vm300, %v298, -inf
    %320 = vmax.xlane.f32.xlu0 %v319
    %v321 = vpop.xlane.xlu0 %320
    %v322 = vsel %vm300, %v299, -inf
    %323 = vmax.xlane.f32.xlu0 %v322
    %v324 = vpop.xlane.xlu0 %323
    %v325 = vsub.f32 %v292, %v303
    %v326 = vsub.f32 %v293, %v306
    %v327 = vsub.f32 %v294, %v309
    %v328 = vsub.f32 %v295, %v312
    %v329 = vsub.f32 %v296, %v315
    %v330 = vsub.f32 %v297, %v318
    %v331 = vsub.f32 %v298, %v321
    %v332 = vsub.f32 %v299, %v324
    %v333 = vmul.f32 %v325, 1.442695
    %v334 = vpow.pop %v333
    %v335 = vmul.f32 %v326, 1.442695
    %v336 = vpow.pop %v335
    %v337 = vmul.f32 %v327, 1.442695
    %v338 = vpow.pop %v337
    %v339 = vmul.f32 %v328, 1.442695
    %v340 = vpow.pop %v339
    %v341 = vmul.f32 %v329, 1.442695
    %v342 = vpow.pop %v341
    %v343 = vmul.f32 %v330, 1.442695
    %v344 = vpow.pop %v343
    %v345 = vmul.f32 %v331, 1.442695
    %v346 = vpow.pop %v345
    %v347 = vmul.f32 %v332, 1.442695
    %v348 = vpow.pop %v347
    %v349 = vsel %vm300, %v334, 0.0
    %350 = vadd.xlane.f32.xlu0 %v349
    %v351 = vpop.xlane.xlu0 %350
    %v352 = vsel %vm300, %v336, 0.0
    %353 = vadd.xlane.f32.xlu0 %v352
    %v354 = vpop.xlane.xlu0 %353
    %v355 = vsel %vm300, %v338, 0.0
    %356 = vadd.xlane.f32.xlu0 %v355
    %v357 = vpop.xlane.xlu0 %356
    %v358 = vsel %vm300, %v340, 0.0
    %359 = vadd.xlane.f32.xlu0 %v358
    %v360 = vpop.xlane.xlu0 %359
    %v361 = vsel %vm300, %v342, 0.0
    %362 = vadd.xlane.f32.xlu0 %v361
    %v363 = vpop.xlane.xlu0 %362
    %v364 = vsel %vm300, %v344, 0.0
    %365 = vadd.xlane.f32.xlu0 %v364
    %v366 = vpop.xlane.xlu0 %365
    %v367 = vsel %vm300, %v346, 0.0
    %368 = vadd.xlane.f32.xlu0 %v367
    %v369 = vpop.xlane.xlu0 %368
    %v370 = vsel %vm300, %v348, 0.0
    %371 = vadd.xlane.f32.xlu0 %v370
    %v372 = vpop.xlane.xlu0 %371
    %v373 = vrcp.pop %v351
    %v374 = vrcp.pop %v354
    %v375 = vrcp.pop %v357
    %v376 = vrcp.pop %v360
    %v377 = vrcp.pop %v363
    %v378 = vrcp.pop %v366
    %v379 = vrcp.pop %v369
    %v380 = vrcp.pop %v372
    %v381 = vmul.f32 %v334, %v373
    %v382 = vmul.f32 %v336, %v374
    %v383 = vmul.f32 %v338, %v375
    %v384 = vmul.f32 %v340, %v376
    %v385 = vmul.f32 %v342, %v377
    %v386 = vmul.f32 %v344, %v378
    %v387 = vmul.f32 %v346, %v379
    %v388 = vmul.f32 %v348, %v380
    %v389 = vpack.c.bf16 %v382, %v381
    %v390 = vpack.c.bf16 %v384, %v383
    %v391 = vpack.c.bf16 %v386, %v385
    %v392 = vpack.c.bf16 %v388, %v387
    %393 = vrot.lane.b32.xlu0 %v214, 64
    %v394 = vpop.permute.xlu0 %393
    %395 = vrot.lane.b32.xlu0 %v215, 64
    %v396 = vpop.permute.xlu0 %395
    %397 = vrot.lane.b32.xlu0 %v216, 64
    %v398 = vpop.permute.xlu0 %397
    %399 = vrot.lane.b32.xlu0 %v217, 64
    %v400 = vpop.permute.xlu0 %399
    %v406 = vsel %vm300, %v389, 0
    %v409 = vsel %vm300, %v390, 0
    %v412 = vsel %vm300, %v391, 0
    %v415 = vsel %vm300, %v392, 0
    %417 = vmatpush.bf16.msra.mxu0 0
    %418 = vmatpush.bf16.msra.mxu0 0
    %419 = vmatpush.bf16.msra.mxu0 0
    %420 = vmatpush.bf16.msra.mxu0 0
    %421 = vmatpush.bf16.msra.mxu0 %v400
    %422 = vmatpush.bf16.msra.mxu0 %v398
    %423 = vmatpush.bf16.msra.mxu0 %v396
    %424 = vmatpush.bf16.msra.mxu0 %v394
    %425 = vmatmul.bf16.gmra.mxu0 %v406
    %v426 = vpop.f32.mrf.mxu0
    %v427 = vadd.f32 0.0, %v426
    %v428 = vpop.f32.mrf.mxu0
    %v429 = vadd.f32 0.0, %v428
    %430 = vmatmul.bf16.gmra.mxu0 %v409
    %v431 = vpop.f32.mrf.mxu0
    %v432 = vadd.f32 0.0, %v431
    %v433 = vpop.f32.mrf.mxu0
    %v434 = vadd.f32 0.0, %v433
    %435 = vmatmul.bf16.gmra.mxu0 %v412
    %v436 = vpop.f32.mrf.mxu0
    %v437 = vadd.f32 0.0, %v436
    %v438 = vpop.f32.mrf.mxu0
    %v439 = vadd.f32 0.0, %v438
    %440 = vmatmul.bf16.gmra.mxu0 %v415
    %v441 = vpop.f32.mrf.mxu0
    %v442 = vadd.f32 0.0, %v441
    %v443 = vpop.f32.mrf.mxu0
    %v444 = vadd.f32 0.0, %v443
    %445 = vdwg.mxu0
    %448 = vrot.lane.b32.xlu0 %v432, 8
    %v449 = vpop.permute.xlu0 %448
    %450 = vrot.lane.b32.xlu0 %v434, 8
    %v451 = vpop.permute.xlu0 %450
    %456 = vrot.lane.b32.xlu0 %v437, 16
    %v457 = vpop.permute.xlu0 %456
    %458 = vrot.lane.b32.xlu0 %v439, 16
    %v459 = vpop.permute.xlu0 %458
    %464 = vrot.lane.b32.xlu0 %v442, 24
    %v465 = vpop.permute.xlu0 %464
    %466 = vrot.lane.b32.xlu0 %v444, 24
    %v467 = vpop.permute.xlu0 %466
    %v470 = vsel %vm230, %v427, %v449
    %v471 = vsel %vm230, %v429, %v451
    %v472 = vsel %vm108, %v470, %v457
    %v473 = vsel %vm108, %v471, %v459
    %vm474 = vcmask 195584
    %v475 = vsel %vm474, %v472, %v465
    %v476 = vsel %vm474, %v473, %v467
    %v477 = vpack.c.bf16 %v476, %v475
    %v478 = vperm.slane %v88, 0
    %v483 = vunpack.c.l.b16 %v69
    %v484 = vunpack.c.l.b16 %v70
    %v485 = vunpack.c.l.b16 %v71
    %v486 = vunpack.c.l.b16 %v72
    %v487 = vpack.c.b16 %v484, %v483
    %v488 = vpack.c.b16 %v486, %v485
    %v492 = vsel %vm140, %v477, 0
    %494 = vmatpush.bf16.msra.mxu0 0
    %495 = vmatpush.bf16.msra.mxu0 0
    %496 = vmatpush.bf16.msra.mxu0 0
    %497 = vmatpush.bf16.msra.mxu0 0
    %498 = vmatpush.bf16.msra.mxu0 0
    %499 = vmatpush.bf16.msra.mxu0 0
    %500 = vmatpush.bf16.msra.mxu0 %v488
    %501 = vmatpush.bf16.msra.mxu0 %v487
    %502 = vmatmul.bf16.gmra.mxu0 %v492
    %v503 = vpop.f32.mrf.mxu0
    %v504 = vadd.f32 %v478, %v503
    %v505 = vpop.f32.mrf.mxu0
    %v506 = vadd.f32 %v478, %v505
    %507 = vdwg.mxu0
    %v508 = vadd.f32 %v122, %v504
    %v509 = vadd.f32 %v124, %v506
    %v510 = vsel %vm140, %v508, 0.0
    %511 = vadd.xlane.f32.xlu0 %v510
    %v512 = vpop.xlane.xlu0 %511
    %v513 = vsel %vm140, %v509, 0.0
    %514 = vadd.xlane.f32.xlu0 %v513
    %v515 = vpop.xlane.xlu0 %514
    %v516 = vrcp.pop 32.0
    %v517 = vmul.f32 32.0, %v516
    %v518 = vsub.f32 1.0, %v517
    %v519 = vmul.f32 %v516, %v518
    %v520 = vadd.f32 %v516, %v519
    %vm521 = vweird.f32 %v516
    %v522 = vsel %vm521, %v516, %v520
    %v523 = vmul.f32 %v512, %v522
    %v524 = vmul.f32 %v515, %v522
    %v525 = vsub.f32 %v508, %v523
    %v526 = vsub.f32 %v509, %v524
    %v527 = vmul.f32 %v525, %v525
    %v528 = vmul.f32 %v526, %v526
    %v529 = vsel %vm140, %v527, 0.0
    %530 = vadd.xlane.f32.xlu0 %v529
    %v531 = vpop.xlane.xlu0 %530
    %v532 = vsel %vm140, %v528, 0.0
    %533 = vadd.xlane.f32.xlu0 %v532
    %v534 = vpop.xlane.xlu0 %533
    %v535 = vmul.f32 %v531, %v522
    %v536 = vmul.f32 %v534, %v522
    %v537 = vadd.f32 %v535, 1e-05
    %v538 = vadd.f32 %v536, 1e-05
    %v539 = vrsqrt.pop %v537
    %v540 = vmul.f32 %v539, %v537
    %v541 = vmul.f32 %v540, %v539
    %v542 = vmul.f32 0.5, %v541
    %v543 = vsub.f32 1.5, %v542
    %v544 = vmul.f32 %v539, %v543
    %vm545 = vweird.f32 %v537
    %vm546 = vweird.f32 %v539
    %vm547 = vmor %vm545, %vm546
    %v548 = vsel %vm547, %v539, %v544
    %v549 = vrsqrt.pop %v538
    %v550 = vmul.f32 %v549, %v538
    %v551 = vmul.f32 %v550, %v549
    %v552 = vmul.f32 0.5, %v551
    %v553 = vsub.f32 1.5, %v552
    %v554 = vmul.f32 %v549, %v553
    %vm555 = vweird.f32 %v538
    %vm556 = vweird.f32 %v549
    %vm557 = vmor %vm555, %vm556
    %v558 = vsel %vm557, %v549, %v554
    %v559 = vmul.f32 %v525, %v548
    %v560 = vmul.f32 %v526, %v558
    %v561 = vperm.slane %v91, 0
    %v562 = vmul.f32 %v559, %v561
    %v563 = vmul.f32 %v560, %v561
    %v564 = vperm.slane %v92, 0
    %v565 = vadd.f32 %v562, %v564
    %v566 = vadd.f32 %v563, %v564
    %v567 = vpack.c.bf16 %v566, %v565
    %v568 = vperm.slane %v89, 0
    %v573 = vunpack.c.l.b16 %v73
    %v574 = vunpack.c.l.b16 %v74
    %v575 = vunpack.c.l.b16 %v75
    %v576 = vunpack.c.l.b16 %v76
    %v577 = vpack.c.b16 %v574, %v573
    %v578 = vpack.c.b16 %v576, %v575
    %v582 = vsel %vm140, %v567, 0
    %584 = vmatpush.bf16.msra.mxu0 0
    %585 = vmatpush.bf16.msra.mxu0 0
    %586 = vmatpush.bf16.msra.mxu0 0
    %587 = vmatpush.bf16.msra.mxu0 0
    %588 = vmatpush.bf16.msra.mxu0 0
    %589 = vmatpush.bf16.msra.mxu0 0
    %590 = vmatpush.bf16.msra.mxu0 %v578
    %591 = vmatpush.bf16.msra.mxu0 %v577
    %592 = vmatmul.bf16.gmra.mxu0 %v582
    %v593 = vpop.f32.mrf.mxu0
    %v594 = vadd.f32 %v568, %v593
    %v595 = vpop.f32.mrf.mxu0
    %v596 = vadd.f32 %v568, %v595
    %597 = vdwg.mxu0
    %v598 = vmax.f32 %v594, 0.0
    %v599 = vmax.f32 %v596, 0.0
    %v600 = vpack.c.bf16 %v599, %v598
    %v601 = vperm.slane %v90, 0
    %v610 = vunpack.c.l.b16 %v77
    %v611 = vunpack.c.l.b16 %v78
    %v612 = vunpack.c.l.b16 %v79
    %v613 = vunpack.c.l.b16 %v80
    %v614 = vunpack.c.l.b16 %v81
    %v615 = vunpack.c.l.b16 %v82
    %v616 = vunpack.c.l.b16 %v83
    %v617 = vunpack.c.l.b16 %v84
    %v618 = vpack.c.b16 %v611, %v610
    %v619 = vpack.c.b16 %v613, %v612
    %v620 = vpack.c.b16 %v615, %v614
    %v621 = vpack.c.b16 %v617, %v616
    %v627 = vsel %vm300, %v600, 0
    %629 = vmatpush.bf16.msra.mxu0 0
    %630 = vmatpush.bf16.msra.mxu0 0
    %631 = vmatpush.bf16.msra.mxu0 0
    %632 = vmatpush.bf16.msra.mxu0 0
    %633 = vmatpush.bf16.msra.mxu0 %v621
    %634 = vmatpush.bf16.msra.mxu0 %v620
    %635 = vmatpush.bf16.msra.mxu0 %v619
    %636 = vmatpush.bf16.msra.mxu0 %v618
    %637 = vmatmul.bf16.gmra.mxu0 %v627
    %v638 = vpop.f32.mrf.mxu0
    %v639 = vadd.f32 %v601, %v638
    %v640 = vpop.f32.mrf.mxu0
    %v641 = vadd.f32 %v601, %v640
    %642 = vdwg.mxu0
    %v643 = vadd.f32 %v565, %v639
    %v644 = vadd.f32 %v566, %v641
    %v645 = vsel %vm140, %v643, 0.0
    %646 = vadd.xlane.f32.xlu0 %v645
    %v647 = vpop.xlane.xlu0 %646
    %v648 = vsel %vm140, %v644, 0.0
    %649 = vadd.xlane.f32.xlu0 %v648
    %v650 = vpop.xlane.xlu0 %649
    %v651 = vmul.f32 %v647, %v522
    %v652 = vmul.f32 %v650, %v522
    %v653 = vsub.f32 %v643, %v651
    %v654 = vsub.f32 %v644, %v652
    %v655 = vmul.f32 %v653, %v653
    %v656 = vmul.f32 %v654, %v654
    %v657 = vsel %vm140, %v655, 0.0
    %658 = vadd.xlane.f32.xlu0 %v657
    %v659 = vpop.xlane.xlu0 %658
    %v660 = vsel %vm140, %v656, 0.0
    %661 = vadd.xlane.f32.xlu0 %v660
    %v662 = vpop.xlane.xlu0 %661
    %v663 = vmul.f32 %v659, %v522
    %v664 = vmul.f32 %v662, %v522
    %v665 = vadd.f32 %v663, 1e-05
    %v666 = vadd.f32 %v664, 1e-05
    %v667 = vrsqrt.pop %v665
    %v668 = vmul.f32 %v667, %v665
    %v669 = vmul.f32 %v668, %v667
    %v670 = vmul.f32 0.5, %v669
    %v671 = vsub.f32 1.5, %v670
    %v672 = vmul.f32 %v667, %v671
    %vm673 = vweird.f32 %v665
    %vm674 = vweird.f32 %v667
    %vm675 = vmor %vm673, %vm674
    %v676 = vsel %vm675, %v667, %v672
    %v677 = vrsqrt.pop %v666
    %v678 = vmul.f32 %v677, %v666
    %v679 = vmul.f32 %v678, %v677
    %v680 = vmul.f32 0.5, %v679
    %v681 = vsub.f32 1.5, %v680
    %v682 = vmul.f32 %v677, %v681
    %vm683 = vweird.f32 %v666
    %vm684 = vweird.f32 %v677
    %vm685 = vmor %vm683, %vm684
    %v686 = vsel %vm685, %v677, %v682
    %v687 = vmul.f32 %v653, %v676
    %v688 = vmul.f32 %v654, %v686
    %v689 = vperm.slane %v93, 0
    %v690 = vmul.f32 %v687, %v689
    %v691 = vmul.f32 %v688, %v689
    %v692 = vperm.slane %v94, 0
    %v693 = vadd.f32 %v690, %v692
    %v694 = vadd.f32 %v691, %v692
    %695 = vst.msk [vmem:[#allocation8] sm:$0xff] %vm140, %v693
    %696 = vst.msk [vmem:[#allocation8 + $0x8] sm:$0xff] %vm140, %v694
    // Predicated region
    $region26: #{tpu_custom_call.1} parent=1 // pred_check
      _
    $region27: #{tpu_custom_call.1} parent=1 // pred_check_branch
      %698 = sbr.rel (0) target = $region29
    $region28: #{tpu_custom_call.1} parent=1 // pred_region
      %700 = vsyncadd [#allocation4], 0
      %s701 = sshll.u32 [#allocation8], 4
      %s702 = int_to_ptr.vmem [resolvable:$true] %s701
      %s703 = sshll.u32 %s3, 4
      %s704 = int_to_ptr.hbm [resolvable:$true] %s703
      %709 = dma.vmem_to_hbm [thread:$0]  %s702, 256, %s704, [#allocation4], 128, 128, 8
    $region29: #{tpu_custom_call.1} parent=1 // pred_fallthru
      _
    // Predicated region
    $region30: #{tpu_custom_call.1} parent=1 // pred_check
      _
    $region31: #{tpu_custom_call.1} parent=1 // pred_check_branch
      %711 = sbr.rel (0) target = $region33
    $region32: #{tpu_custom_call.1} parent=1 // pred_region
      %713 = dma.done [#allocation4], 256
    $region33: #{tpu_custom_call.1} parent=1 // pred_fallthru
      _
    %714 = vsyncpa [#allocation3], 1
    %715 = vsyncpa [#allocation6], 1
    %716 = vsyncpa [#allocation4], 1

</llo_original>
